<compile_context>
chip_gen: v7x
topology: tpu7x:2x2x1
jax: 0.10.0
libtpu: 0.0.40
codegen_flags: <defaults>
</compile_context>

<pallas_src>
import functools

import jax
import jax.numpy as jnp
from jax.experimental import pallas as pl
from jax.experimental.pallas import tpu as pltpu

A_COEF = 10.0
NEG_FACTOR = 2.0
UNDER_FACTOR = 2.0

LANE = 512            # lane (last) dim of the 2-D slab; multiple of 128
MAX_BLOCK_ROWS = 512  # sublane rows per block; (512, 512) f32 = 1 MiB per input
NUM_CHUNKS = 2        # parallel grid axis (megacore on v7x)


def _loss_kernel(yp_ref, yt_ref, acc_ref, *, a, neg_factor, under_factor):
    # acc_ref is this chunk's (block_rows, LANE) output block.  Its block
    # index is constant along the inner grid axis, so it stays resident in
    # VMEM and acts as a vector-shaped partial accumulator.
    @pl.when(pl.program_id(1) == 0)
    def _():
        acc_ref[...] = jnp.zeros_like(acc_ref)

    yp = yp_ref[...].astype(jnp.float32)
    yt = yt_ref[...].astype(jnp.float32)

    mae = jnp.abs(yp - yt)
    # log((|yp|+1)/(yt+1)) == log(|yp|+1) - log(yt+1): avoids the f32 divide
    # (EUP reciprocal + Newton-Raphson VPU FMAs).
    log_ratio = jnp.log(jnp.abs(yp) + 1.0) - jnp.log(yt + 1.0)
    # 100*(a*lr^2 + mae) with constants folded: two muls + one add.
    loss = (100.0 * a) * (log_ratio * log_ratio) + 100.0 * mae
    # where(cond, f, 1) == 1 + (f-1)*mask, minus a convert, a mul and an add.
    weighted = (loss
                * jnp.where(yp < 0.0, jnp.float32(neg_factor), jnp.float32(1.0))
                * jnp.where(yp < yt, jnp.float32(under_factor), jnp.float32(1.0)))

    acc_ref[...] += weighted


def mae_log_mse_penalize_loss(y_pred, y_true,
                              a=A_COEF, np_factor=NEG_FACTOR,
                              up_factor=UNDER_FACTOR):
    assert y_pred.shape == y_true.shape
    n_elem = y_pred.size

    yp = jnp.ravel(y_pred)
    yt = jnp.ravel(y_true)

    # Static geometry.
    rows = pl.cdiv(n_elem, LANE)
    rows = pl.cdiv(rows, 8) * 8                     # sublane-align
    block_rows = min(MAX_BLOCK_ROWS, rows)
    num_blocks = pl.cdiv(rows, block_rows)
    chunks = 1 if num_blocks == 1 else NUM_CHUNKS
    inner = pl.cdiv(num_blocks, chunks)
    rows = chunks * inner * block_rows
    padded = rows * LANE

    # Zero padding contributes exactly 0 (mae=0, log(1/1)=0, both masks
    # false); the mean divides by the true element count below.
    pad = padded - n_elem
    if pad:
        yp = jnp.pad(yp, (0, pad))
        yt = jnp.pad(yt, (0, pad))
    yp2 = yp.reshape(rows, LANE)
    yt2 = yt.reshape(rows, LANE)

    kernel = functools.partial(_loss_kernel, a=a,
                               neg_factor=np_factor, under_factor=up_factor)

    in_map = lambda c, i: (c * inner + i, 0)

    partials = pl.pallas_call(
        kernel,
        out_shape=jax.ShapeDtypeStruct((chunks, block_rows, LANE), jnp.float32),
        grid_spec=pltpu.PrefetchScalarGridSpec(
            num_scalar_prefetch=0,
            grid=(chunks, inner),
            in_specs=[
                pl.BlockSpec((block_rows, LANE), in_map),
                pl.BlockSpec((block_rows, LANE), in_map),
            ],
            out_specs=pl.BlockSpec((None, block_rows, LANE),
                                   lambda c, i: (c, 0, 0)),
        ),
        compiler_params=pltpu.CompilerParams(
            dimension_semantics=("parallel", "arbitrary"),
        ),
    )(yp2, yt2)

    # Single final reduction of the small per-chunk partials (outside the
    # kernel so the parallel chunk axis needs no cross-core sync).
    return jnp.sum(partials) / jnp.float32(n_elem)


def _reference(y_pred, y_true, a=A_COEF, np_factor=NEG_FACTOR,
               up_factor=UNDER_FACTOR):
    yp = y_pred.astype(jnp.float32)
    yt = y_true.astype(jnp.float32)
    mae = jnp.abs(yp - yt)
    lel = jnp.log((jnp.abs(yp) + 1.0) / (yt + 1.0)) ** 2
    neg = (yp < 0.0).astype(jnp.float32)
    under = (yp < yt).astype(jnp.float32)
    loss = 100.0 * (a * lel + mae)
    w = loss * (1.0 + (np_factor - 1.0) * neg) * (1.0 + (up_factor - 1.0) * under)
    return jnp.mean(w)


if __name__ == "__main__":
    key = jax.random.PRNGKey(0)
    k1, k2 = jax.random.split(key)
    # y_pred: arbitrary reals; y_true: keep > -1 so the log argument is positive
    y_pred = jax.random.normal(k1, (2, 4, 16, 16), dtype=jnp.float32)
    y_true = jax.random.uniform(k2, (2, 4, 16, 16), dtype=jnp.float32,
                                minval=0.0, maxval=2.0)

    out = mae_log_mse_penalize_loss(y_pred, y_true)
    out = jax.block_until_ready(out)

    ref = _reference(y_pred, y_true)
    assert jnp.allclose(out, ref, rtol=1e-4, atol=1e-4), (out, ref)
    print("KERNEL_OK")
</pallas_src>

<mosaic_0001>
module attributes {stable_mosaic.version = 11 : i64} {
  func.func @_loss_kernel(%arg0: i32, %arg1: i32, %arg2: memref<8x512xf32, #tpu.memory_space<vmem>>, %arg3: memref<8x512xf32, #tpu.memory_space<vmem>>, %arg4: memref<1x8x512xf32, #tpu.memory_space<vmem>>) attributes {dimension_semantics = [#tpu.dimension_semantics<parallel>, #tpu.dimension_semantics<arbitrary>], iteration_bounds = array<i64: 1, 1>, scalar_prefetch = 0 : i64, scratch_operands = 0 : i64, tpu.core_type = #tpu.core_type<tc>, window_params = [{transform_indices = @transform_0, window_bounds = array<i64: 8, 512>}, {transform_indices = @transform_1, window_bounds = array<i64: 8, 512>}, {transform_indices = @transform_2, window_bounds = array<i64: 1, 8, 512>}]} {
    %c0_i32 = arith.constant 0 : i32
    %0 = arith.cmpi eq, %arg1, %c0_i32 : i32
    %1 = arith.extui %0 : i1 to i32
    %c0_i32_0 = arith.constant 0 : i32
    %2 = arith.cmpi ne, %1, %c0_i32_0 : i32
    scf.if %2 {
      %cst_18 = arith.constant 0.000000e+00 : f32
      %38 = vector.broadcast %cst_18 : f32 to vector<8x512xf32>
      %c0_19 = arith.constant 0 : index
      %c0_20 = arith.constant 0 : index
      %c0_21 = arith.constant 0 : index
      %39 = vector.load %arg4[%c0_19, %c0_20, %c0_21] : memref<1x8x512xf32, #tpu.memory_space<vmem>>, vector<1x8x512xf32>
      %40 = vector.shape_cast %39 : vector<1x8x512xf32> to vector<8x512xf32>
      %41 = vector.shape_cast %38 : vector<8x512xf32> to vector<1x8x512xf32>
      tpu.vector_store %arg4[%c0_19, %c0_20, %c0_21], %41 {strides = array<i32>} : memref<1x8x512xf32, #tpu.memory_space<vmem>>, vector<1x8x512xf32>,
    } else {
    }
    %c0 = arith.constant 0 : index
    %c0_1 = arith.constant 0 : index
    %3 = vector.load %arg2[%c0, %c0_1] : memref<8x512xf32, #tpu.memory_space<vmem>>, vector<8x512xf32>
    %c0_2 = arith.constant 0 : index
    %c0_3 = arith.constant 0 : index
    %4 = vector.load %arg3[%c0_2, %c0_3] : memref<8x512xf32, #tpu.memory_space<vmem>>, vector<8x512xf32>
    %5 = arith.subf %3, %4 : vector<8x512xf32>
    %6 = math.absf %5 : vector<8x512xf32>
    %7 = math.absf %3 : vector<8x512xf32>
    %cst = arith.constant 1.000000e+00 : f32
    %8 = vector.broadcast %cst : f32 to vector<8x512xf32>
    %9 = arith.addf %7, %8 : vector<8x512xf32>
    %10 = math.log %9 : vector<8x512xf32>
    %cst_4 = arith.constant 1.000000e+00 : f32
    %11 = vector.broadcast %cst_4 : f32 to vector<8x512xf32>
    %12 = arith.addf %4, %11 : vector<8x512xf32>
    %13 = math.log %12 : vector<8x512xf32>
    %14 = arith.subf %10, %13 : vector<8x512xf32>
    %15 = arith.mulf %14, %14 : vector<8x512xf32>
    %cst_5 = arith.constant 1.000000e+03 : f32
    %16 = vector.broadcast %cst_5 : f32 to vector<8x512xf32>
    %17 = arith.mulf %16, %15 : vector<8x512xf32>
    %cst_6 = arith.constant 1.000000e+02 : f32
    %18 = vector.broadcast %cst_6 : f32 to vector<8x512xf32>
    %19 = arith.mulf %18, %6 : vector<8x512xf32>
    %20 = arith.addf %17, %19 : vector<8x512xf32>
    %cst_7 = arith.constant 0.000000e+00 : f32
    %21 = vector.broadcast %cst_7 : f32 to vector<8x512xf32>
    %22 = arith.cmpf olt, %3, %21 : vector<8x512xf32>
    %cst_8 = arith.constant 2.000000e+00 : f32
    %cst_9 = arith.constant 1.000000e+00 : f32
    %23 = vector.broadcast %cst_8 : f32 to vector<8x512xf32>
    %24 = vector.broadcast %cst_9 : f32 to vector<8x512xf32>
    %25 = arith.select %22, %23, %24 : vector<8x512xi1>, vector<8x512xf32>
    %26 = arith.mulf %20, %25 : vector<8x512xf32>
    %27 = arith.cmpf olt, %3, %4 : vector<8x512xf32>
    %cst_10 = arith.constant 2.000000e+00 : f32
    %cst_11 = arith.constant 1.000000e+00 : f32
    %28 = vector.broadcast %cst_10 : f32 to vector<8x512xf32>
    %29 = vector.broadcast %cst_11 : f32 to vector<8x512xf32>
    %30 = arith.select %27, %28, %29 : vector<8x512xi1>, vector<8x512xf32>
    %31 = arith.mulf %26, %30 : vector<8x512xf32>
    %c0_12 = arith.constant 0 : index
    %c0_13 = arith.constant 0 : index
    %c0_14 = arith.constant 0 : index
    %32 = vector.load %arg4[%c0_12, %c0_13, %c0_14] : memref<1x8x512xf32, #tpu.memory_space<vmem>>, vector<1x8x512xf32>
    %33 = vector.shape_cast %32 : vector<1x8x512xf32> to vector<8x512xf32>
    %34 = arith.addf %33, %31 : vector<8x512xf32>
    %c0_15 = arith.constant 0 : index
    %c0_16 = arith.constant 0 : index
    %c0_17 = arith.constant 0 : index
    %35 = vector.load %arg4[%c0_15, %c0_16, %c0_17] : memref<1x8x512xf32, #tpu.memory_space<vmem>>, vector<1x8x512xf32>
    %36 = vector.shape_cast %35 : vector<1x8x512xf32> to vector<8x512xf32>
    %37 = vector.shape_cast %34 : vector<8x512xf32> to vector<1x8x512xf32>
    tpu.vector_store %arg4[%c0_15, %c0_16, %c0_17], %37 {strides = array<i32>} : memref<1x8x512xf32, #tpu.memory_space<vmem>>, vector<1x8x512xf32>,
    return
  }
  func.func @transform_0(%arg0: i32, %arg1: i32) -> (i32, i32) {
    %c1_i32 = arith.constant 1 : i32
    %0 = arith.muli %arg0, %c1_i32 : i32
    %1 = arith.addi %0, %arg1 : i32
    %c0_i32 = arith.constant 0 : i32
    %c0_i32_0 = arith.constant 0 : i32
    return %1, %c0_i32 : i32, i32
  }
  func.func @transform_1(%arg0: i32, %arg1: i32) -> (i32, i32) {
    %c1_i32 = arith.constant 1 : i32
    %0 = arith.muli %arg0, %c1_i32 : i32
    %1 = arith.addi %0, %arg1 : i32
    %c0_i32 = arith.constant 0 : i32
    %c0_i32_0 = arith.constant 0 : i32
    return %1, %c0_i32 : i32, i32
  }
  func.func @transform_2(%arg0: i32, %arg1: i32) -> (i32, i32, i32) {
    %c0_i32 = arith.constant 0 : i32
    %c0_i32_0 = arith.constant 0 : i32
    %c0_i32_1 = arith.constant 0 : i32
    return %arg0, %c0_i32, %c0_i32_0 : i32, i32, i32
  }
}

</mosaic_0001>

<llo_original>
// kernel: tpu_custom_call.1
$region0: #{tpu_custom_call.1}
  #allocation0 [shape = 'u32[]', space=smem, size = 0x4, offset = 0x4, fixed_abs, tag = 'smem constant byte address 0x4 - core index']
  #allocation1 [shape = 'u32[144,128]{1,0:T(1,128)}', space=vmem, size = 0x12000, scoped, tag = 'internal scratch']
  %s0 = inlined_call_operand.hbm [shape: f32[8,512], index: 0, kind: input, shape index: {}]
  %s1 = inlined_call_operand.hbm [shape: f32[8,512], index: 1, kind: input, shape index: {}]
  %s2 = inlined_call_operand.hbm [shape: f32[1,8,512], index: 2, kind: output, shape index: {}]
  %s3 = sld [smem:[#allocation0]]
  $region30: #{tpu_custom_call.1} parent=0
    _
  %s5 = ssub.s32 1, %s3
  %s6 = scalar_select 0, %s5, %s3
  $region1: #{tpu_custom_call.1} parent=0
    #allocation2 [shape = 'u8[16384]{0}', space=vmem, size = 0x4000, scoped, tag = 'input window, operand 0, single buffered']
    #allocation3 [shape = 's32[1]{0}', space=sflag, size = 0x4, scoped, tag = 'scoped memory for tpu_custom_call.1']
    #allocation4 [shape = 's32[1]{0}', space=sflag, size = 0x4, scoped, tag = 'scoped memory for tpu_custom_call.1']
    #allocation5 [shape = 'u8[16384]{0}', space=vmem, size = 0x4000, scoped, tag = 'input window, operand 1, single buffered']
    #allocation6 [shape = 's32[1]{0}', space=sflag, size = 0x4, scoped, tag = 'scoped memory for tpu_custom_call.1']
    #allocation7 [shape = 'u8[16384]{0}', space=vmem, size = 0x4000, scoped, tag = 'output window, operand 0, single buffered']
    %7 = vsyncpa [#allocation3], 0
    %8 = vsyncpa [#allocation6], 0
    %9 = vsyncpa [#allocation4], 0
    // Predicated region
    $region2: #{tpu_custom_call.1} parent=1 // pred_check
      _
    $region3: #{tpu_custom_call.1} parent=1 // pred_check_branch
      %11 = sbr.rel (0) target = $region5
    $region4: #{tpu_custom_call.1} parent=1 // pred_region
      %s12 = sadd.s32 0, 0
      %s14 = ssub.s32 512, 512
      %15 = vsyncadd [#allocation3], %s14
      %s16 = smul.addr %s12, 4
      %s17 = smul.addr %s16, 128
      %s18 = scalar_lea.hbm %s0, %s17
      %s20 = sshll.u32 [#allocation2], 4
      %s21 = int_to_ptr.vmem [resolvable:$true] %s20
      %23 = dma.hbm_to_vmem [thread:$0]  %s18, 512, %s21, [#allocation3]
    $region5: #{tpu_custom_call.1} parent=1 // pred_fallthru
      _
    // Predicated region
    $region6: #{tpu_custom_call.1} parent=1 // pred_check
      _
    $region7: #{tpu_custom_call.1} parent=1 // pred_check_branch
      %25 = sbr.rel (0) target = $region9
    $region8: #{tpu_custom_call.1} parent=1 // pred_region
      %s26 = sadd.s32 0, 0
      %s28 = ssub.s32 512, 512
      %29 = vsyncadd [#allocation6], %s28
      %s30 = smul.addr %s26, 4
      %s31 = smul.addr %s30, 128
      %s32 = scalar_lea.hbm %s1, %s31
      %s34 = sshll.u32 [#allocation5], 4
      %s35 = int_to_ptr.vmem [resolvable:$true] %s34
      %37 = dma.hbm_to_vmem [thread:$0]  %s32, 512, %s35, [#allocation6]
    $region9: #{tpu_custom_call.1} parent=1 // pred_fallthru
      _
    // Predicated region
    $region10: #{tpu_custom_call.1} parent=1 // pred_check
      _
    $region11: #{tpu_custom_call.1} parent=1 // pred_check_branch
      %39 = sbr.rel (0) target = $region13
    $region12: #{tpu_custom_call.1} parent=1 // pred_region
      %40 = dma.done [#allocation3], 512
    $region13: #{tpu_custom_call.1} parent=1 // pred_fallthru
      _
    // Predicated region
    $region14: #{tpu_custom_call.1} parent=1 // pred_check
      _
    $region15: #{tpu_custom_call.1} parent=1 // pred_check_branch
      %42 = sbr.rel (0) target = $region17
    $region16: #{tpu_custom_call.1} parent=1 // pred_region
      %43 = dma.done [#allocation6], 512
    $region17: #{tpu_custom_call.1} parent=1 // pred_fallthru
      _
    %s44 = sadd.s32 0, 0
    %s45 = sadd.s32 0, 0
    %p46 = scmp.eq.s32.totalorder 0, 0
    // Predicated region
    $region18: #{tpu_custom_call.1} parent=1 // pred_check
      %p47 = pneg %p46
    $region19: #{tpu_custom_call.1} parent=1 // pred_check_branch
      %49 = sbr.rel (%p47) target = $region21
    $region20: #{tpu_custom_call.1} parent=1 // pred_region
      %50 = vst [vmem:[#allocation7] sm:$0xff] 0.0
      %51 = vst [vmem:[#allocation7 + $0x8] sm:$0xff] 0.0
      %52 = vst [vmem:[#allocation7 + $0x10] sm:$0xff] 0.0
      %53 = vst [vmem:[#allocation7 + $0x18] sm:$0xff] 0.0
    $region21: #{tpu_custom_call.1} parent=1 // pred_fallthru
      _
    %v54 = vld [vmem:[#allocation2] sm:$0xff]
    %v55 = vld [vmem:[#allocation2 + $0x8] sm:$0xff]
    %v56 = vld [vmem:[#allocation2 + $0x10] sm:$0xff]
    %v57 = vld [vmem:[#allocation2 + $0x18] sm:$0xff]
    %v58 = vld [vmem:[#allocation5] sm:$0xff]
    %v59 = vld [vmem:[#allocation5 + $0x8] sm:$0xff]
    %v60 = vld [vmem:[#allocation5 + $0x10] sm:$0xff]
    %v61 = vld [vmem:[#allocation5 + $0x18] sm:$0xff]
    %v62 = vsub.f32 %v54, %v58
    %v63 = vsub.f32 %v55, %v59
    %v64 = vsub.f32 %v56, %v60
    %v65 = vsub.f32 %v57, %v61
    %v66 = vand.u32 2147483647, %v62
    %v67 = vand.u32 2147483647, %v63
    %v68 = vand.u32 2147483647, %v64
    %v69 = vand.u32 2147483647, %v65
    %v70 = vand.u32 2147483647, %v54
    %v71 = vand.u32 2147483647, %v55
    %v72 = vand.u32 2147483647, %v56
    %v73 = vand.u32 2147483647, %v57
    %v74 = vadd.f32 %v70, 1.0
    %v75 = vadd.f32 %v71, 1.0
    %v76 = vadd.f32 %v72, 1.0
    %v77 = vadd.f32 %v73, 1.0
    %v78 = vlog2.pop %v74
    %v79 = vmul.f32 %v78, 0.6931472
    %v80 = vlog2.pop %v75
    %v81 = vmul.f32 %v80, 0.6931472
    %v82 = vlog2.pop %v76
    %v83 = vmul.f32 %v82, 0.6931472
    %v84 = vlog2.pop %v77
    %v85 = vmul.f32 %v84, 0.6931472
    %v86 = vadd.f32 %v58, 1.0
    %v87 = vadd.f32 %v59, 1.0
    %v88 = vadd.f32 %v60, 1.0
    %v89 = vadd.f32 %v61, 1.0
    %v90 = vlog2.pop %v86
    %v91 = vmul.f32 %v90, 0.6931472
    %v92 = vlog2.pop %v87
    %v93 = vmul.f32 %v92, 0.6931472
    %v94 = vlog2.pop %v88
    %v95 = vmul.f32 %v94, 0.6931472
    %v96 = vlog2.pop %v89
    %v97 = vmul.f32 %v96, 0.6931472
    %v98 = vsub.f32 %v79, %v91
    %v99 = vsub.f32 %v81, %v93
    %v100 = vsub.f32 %v83, %v95
    %v101 = vsub.f32 %v85, %v97
    %v102 = vmul.f32 %v98, %v98
    %v103 = vmul.f32 %v99, %v99
    %v104 = vmul.f32 %v100, %v100
    %v105 = vmul.f32 %v101, %v101
    %v106 = vmul.f32 %v102, 1000.0
    %v107 = vmul.f32 %v103, 1000.0
    %v108 = vmul.f32 %v104, 1000.0
    %v109 = vmul.f32 %v105, 1000.0
    %v110 = vmul.f32 %v66, 100.0
    %v111 = vmul.f32 %v67, 100.0
    %v112 = vmul.f32 %v68, 100.0
    %v113 = vmul.f32 %v69, 100.0
    %v114 = vadd.f32 %v106, %v110
    %v115 = vadd.f32 %v107, %v111
    %v116 = vadd.f32 %v108, %v112
    %v117 = vadd.f32 %v109, %v113
    %vm118 = vcmp.lt.f32.partialorder %v54, 0.0
    %vm119 = vcmp.lt.f32.partialorder %v55, 0.0
    %vm120 = vcmp.lt.f32.partialorder %v56, 0.0
    %vm121 = vcmp.lt.f32.partialorder %v57, 0.0
    %v122 = vsel %vm118, 2.0, 1.0
    %v123 = vsel %vm119, 2.0, 1.0
    %v124 = vsel %vm120, 2.0, 1.0
    %v125 = vsel %vm121, 2.0, 1.0
    %v126 = vmul.f32 %v114, %v122
    %v127 = vmul.f32 %v115, %v123
    %v128 = vmul.f32 %v116, %v124
    %v129 = vmul.f32 %v117, %v125
    %vm130 = vcmp.lt.f32.partialorder %v54, %v58
    %vm131 = vcmp.lt.f32.partialorder %v55, %v59
    %vm132 = vcmp.lt.f32.partialorder %v56, %v60
    %vm133 = vcmp.lt.f32.partialorder %v57, %v61
    %v134 = vsel %vm130, 2.0, 1.0
    %v135 = vsel %vm131, 2.0, 1.0
    %v136 = vsel %vm132, 2.0, 1.0
    %v137 = vsel %vm133, 2.0, 1.0
    %v138 = vmul.f32 %v126, %v134
    %v139 = vmul.f32 %v127, %v135
    %v140 = vmul.f32 %v128, %v136
    %v141 = vmul.f32 %v129, %v137
    %v142 = vld [vmem:[#allocation7] sm:$0xff]
    %v143 = vld [vmem:[#allocation7 + $0x8] sm:$0xff]
    %v144 = vld [vmem:[#allocation7 + $0x10] sm:$0xff]
    %v145 = vld [vmem:[#allocation7 + $0x18] sm:$0xff]
    %v146 = vadd.f32 %v142, %v138
    %v147 = vadd.f32 %v143, %v139
    %v148 = vadd.f32 %v144, %v140
    %v149 = vadd.f32 %v145, %v141
    %150 = vst [vmem:[#allocation7] sm:$0xff] %v146
    %151 = vst [vmem:[#allocation7 + $0x8] sm:$0xff] %v147
    %152 = vst [vmem:[#allocation7 + $0x10] sm:$0xff] %v148
    %153 = vst [vmem:[#allocation7 + $0x18] sm:$0xff] %v149
    // Predicated region
    $region22: #{tpu_custom_call.1} parent=1 // pred_check
      _
    $region23: #{tpu_custom_call.1} parent=1 // pred_check_branch
      %155 = sbr.rel (0) target = $region25
    $region24: #{tpu_custom_call.1} parent=1 // pred_region
      %s157 = ssub.s32 512, 512
      %158 = vsyncadd [#allocation4], %s157
      %s160 = sshll.u32 [#allocation7], 4
      %s161 = int_to_ptr.vmem [resolvable:$true] %s160
      %163 = dma.vmem_to_hbm [thread:$0]  %s161, 512, %s2, [#allocation4]
    $region25: #{tpu_custom_call.1} parent=1 // pred_fallthru
      _
    // Predicated region
    $region26: #{tpu_custom_call.1} parent=1 // pred_check
      _
    $region27: #{tpu_custom_call.1} parent=1 // pred_check_branch
      %165 = sbr.rel (0) target = $region29
    $region28: #{tpu_custom_call.1} parent=1 // pred_region
      %166 = dma.done [#allocation4], 512
    $region29: #{tpu_custom_call.1} parent=1 // pred_fallthru
      _
    %167 = vsyncpa [#allocation3], 1
    %168 = vsyncpa [#allocation6], 1
    %169 = vsyncpa [#allocation4], 1

</llo_original>
